<compile_context>
chip_gen: v7x
topology: tpu7x:2x2x1
jax: 0.10.0
libtpu: 0.0.40
codegen_flags: <defaults>
</compile_context>

<pallas_src>
import functools

import jax
import jax.numpy as jnp
from jax.experimental import pallas as pl
from jax.experimental.pallas import tpu as pltpu

ENCODED_DIM = 64      # encoded_dim fed to LinearProbe
NUM_CLASSES = 10      # default num_classes in the module


def _round_up(x, m):
    return (x + m - 1) // m * m


# -------------------------- Pallas kernel --------------------------

def _linear_kernel(x_ref, w_ref, b_ref, o_ref):
    """One (tm, tn) output tile of x @ w + b.

    Grid = (M, N, K); axis 2 (K) is the reduction.  The f32 output tile is
    resident across K and doubles as the accumulator: it is initialized with
    the broadcast bias at k == 0 and accumulated into on every K step.
    """
    k = pl.program_id(2)

    @pl.when(k == 0)
    def _():
        o_ref[...] = jnp.broadcast_to(b_ref[...], o_ref.shape)

    # Cast activations to bf16 in-register; bf16 x bf16 -> f32 on the MXU.
    o_ref[...] += jnp.dot(x_ref[...].astype(jnp.bfloat16), w_ref[...],
                          preferred_element_type=jnp.float32)


def linear_pallas(x_f32, w_bf16, b_f32):
    """out = x @ w + b.

    x: (Mp, Kp) f32 (cast to bf16 inside the kernel)
    w: (Kp, Np) bf16
    b: (1, Np)  f32
    The wrapper guarantees Mp/Np/Kp are multiples of the tiles chosen here.
    """
    Mp, Kp = x_f32.shape
    Np = w_bf16.shape[1]

    # Tiles: full extent for small dims (probe: 8 x 64 x 128 => grid (1,1,1)),
    # MXU-friendly 512 x 256 x 1024 tiles for large problems.
    tm = Mp if Mp <= 512 else 512
    tn = 256 if (Np >= 256 and Np % 256 == 0) else min(Np, 128)
    tk = Kp if Kp <= 1024 else 512

    grid = (Mp // tm, Np // tn, Kp // tk)

    return pl.pallas_call(
        _linear_kernel,
        grid_spec=pltpu.PrefetchScalarGridSpec(
            num_scalar_prefetch=0,
            grid=grid,
            in_specs=[
                pl.BlockSpec((tm, tk), lambda i, j, k: (i, k)),   # x tile (f32)
                pl.BlockSpec((tk, tn), lambda i, j, k: (k, j)),   # w tile (bf16)
                pl.BlockSpec((1, tn), lambda i, j, k: (0, j)),    # bias tile
            ],
            out_specs=pl.BlockSpec((tm, tn), lambda i, j, k: (i, j)),
        ),
        out_shape=jax.ShapeDtypeStruct((Mp, Np), jnp.float32),
        compiler_params=pltpu.CompilerParams(
            dimension_semantics=("parallel", "parallel", "arbitrary"),
        ),
    )(x_f32, w_bf16, b_f32)


# -------------------------- parameters & forward --------------------------

def init_params(key, encoded_dim=ENCODED_DIM, num_classes=NUM_CLASSES):
    """torch.nn.Linear default init: U(-1/sqrt(fan_in), 1/sqrt(fan_in))."""
    kw, kb = jax.random.split(key)
    bound = 1.0 / (encoded_dim ** 0.5)
    w = jax.random.uniform(kw, (num_classes, encoded_dim), jnp.float32,
                           -bound, bound)
    b = jax.random.uniform(kb, (num_classes,), jnp.float32, -bound, bound)
    return {"w": w, "b": b}


def prepare_params(params):
    """One-time prep: transpose (N,K)->(K,N), cast to bf16, pad N to a
    lane-dense multiple of 128.  K is left unpadded (full-extent block) unless
    encoded_dim > 1024, in which case it is padded to a 512 tile multiple."""
    w = params["w"]                      # (num_classes, encoded_dim)
    b = params["b"]
    n_classes, k_dim = w.shape
    Kp = k_dim if k_dim <= 1024 else _round_up(k_dim, 512)
    Np = _round_up(n_classes, 128)
    wT = jnp.zeros((Kp, Np), jnp.bfloat16).at[:k_dim, :n_classes].set(
        w.T.astype(jnp.bfloat16))
    bp = jnp.zeros((1, Np), jnp.float32).at[0, :n_classes].set(
        b.astype(jnp.float32))
    return wT, bp


@functools.partial(jax.jit, static_argnames=("out_dim",))
def linear_probe_forward(x, wT, bp, *, out_dim):
    """LinearProbe.forward: logits = x @ W.T + b  (f32 logits)."""
    B, K = x.shape
    Kp, Np = wT.shape

    # Pad only when needed (fusable jnp.pad); for the common probe shapes
    # (B % 8 == 0, K == Kp) x is passed through untouched.
    if B <= 512:
        Mp = B if B % 8 == 0 else _round_up(B, 8)
    else:
        Mp = _round_up(B, 512)
    xp = x
    if (Mp, Kp) != (B, K):
        xp = jnp.pad(x, ((0, Mp - B), (0, Kp - K)))

    out = linear_pallas(xp, wT, bp)
    return out[:B, :out_dim]


# -------------------------- driver --------------------------

if __name__ == "__main__":
    key = jax.random.PRNGKey(0)
    pkey, xkey = jax.random.split(key)

    params = init_params(pkey)
    wT, bp = prepare_params(params)

    B = 8
    x = jax.random.normal(xkey, (B, ENCODED_DIM), jnp.float32)

    logits = linear_probe_forward(x, wT, bp, out_dim=NUM_CLASSES)
    logits = jax.block_until_ready(logits)

    # Reference with the same bf16 operand rounding (f32 accumulation).
    ref = (x.astype(jnp.bfloat16).astype(jnp.float32)
           @ params["w"].T.astype(jnp.bfloat16).astype(jnp.float32)
           + params["b"])

    assert logits.shape == (B, NUM_CLASSES), logits.shape
    assert bool(jnp.all(jnp.isfinite(logits)))
    assert bool(jnp.allclose(logits, ref, rtol=1e-2, atol=1e-2)), (
        float(jnp.max(jnp.abs(logits - ref))))
    print("KERNEL_OK")
</pallas_src>

<mosaic_0001>
module attributes {stable_mosaic.version = 11 : i64} {
  func.func @_linear_kernel(%arg0: i32, %arg1: i32, %arg2: i32, %arg3: memref<8x64xf32, #tpu.memory_space<vmem>>, %arg4: memref<64x128xbf16, #tpu.memory_space<vmem>>, %arg5: memref<1x128xf32, #tpu.memory_space<vmem>>, %arg6: memref<8x128xf32, #tpu.memory_space<vmem>>) attributes {dimension_semantics = [#tpu.dimension_semantics<parallel>, #tpu.dimension_semantics<parallel>, #tpu.dimension_semantics<arbitrary>], iteration_bounds = array<i64: 1, 1, 1>, scalar_prefetch = 0 : i64, scratch_operands = 0 : i64, tpu.core_type = #tpu.core_type<tc>, window_params = [{transform_indices = @transform_0, window_bounds = array<i64: 8, 64>}, {transform_indices = @transform_1, window_bounds = array<i64: 64, 128>}, {transform_indices = @transform_2, window_bounds = array<i64: 1, 128>}, {transform_indices = @transform_3, window_bounds = array<i64: 8, 128>}]} {
    %c0_i32 = arith.constant 0 : i32
    %0 = arith.cmpi eq, %arg2, %c0_i32 : i32
    %1 = arith.extui %0 : i1 to i32
    %c0_i32_0 = arith.constant 0 : i32
    %2 = arith.cmpi ne, %1, %c0_i32_0 : i32
    scf.if %2 {
      %c0_8 = arith.constant 0 : index
      %c0_9 = arith.constant 0 : index
      %10 = vector.load %arg5[%c0_8, %c0_9] : memref<1x128xf32, #tpu.memory_space<vmem>>, vector<1x128xf32>
      %11 = vector.shape_cast %10 : vector<1x128xf32> to vector<1x128xf32>
      %12 = vector.broadcast %11 : vector<1x128xf32> to vector<8x128xf32>
      %c0_10 = arith.constant 0 : index
      %c0_11 = arith.constant 0 : index
      %13 = vector.load %arg6[%c0_10, %c0_11] : memref<8x128xf32, #tpu.memory_space<vmem>>, vector<8x128xf32>
      tpu.vector_store %arg6[%c0_10, %c0_11], %12 {strides = array<i32>} : memref<8x128xf32, #tpu.memory_space<vmem>>, vector<8x128xf32>,
    } else {
    }
    %c0 = arith.constant 0 : index
    %c0_1 = arith.constant 0 : index
    %3 = vector.load %arg6[%c0, %c0_1] : memref<8x128xf32, #tpu.memory_space<vmem>>, vector<8x128xf32>
    %c0_2 = arith.constant 0 : index
    %c0_3 = arith.constant 0 : index
    %4 = vector.load %arg3[%c0_2, %c0_3] : memref<8x64xf32, #tpu.memory_space<vmem>>, vector<8x64xf32>
    %5 = arith.truncf %4 : vector<8x64xf32> to vector<8x64xbf16>
    %c0_4 = arith.constant 0 : index
    %c0_5 = arith.constant 0 : index
    %6 = vector.load %arg4[%c0_4, %c0_5] : memref<64x128xbf16, #tpu.memory_space<vmem>>, vector<64x128xbf16>
    %cst = arith.constant dense<0.000000e+00> : vector<8x128xf32>
    %7 = tpu.matmul %5, %6, %cst {dimension_numbers = #tpu.dot_dimension_numbers<[1], [0], [0], [1], [0, 0, 1, 1], [], []>} : vector<8x64xbf16>, vector<64x128xbf16>, vector<8x128xf32> -> vector<8x128xf32>
    %8 = arith.addf %3, %7 : vector<8x128xf32>
    %c0_6 = arith.constant 0 : index
    %c0_7 = arith.constant 0 : index
    %9 = vector.load %arg6[%c0_6, %c0_7] : memref<8x128xf32, #tpu.memory_space<vmem>>, vector<8x128xf32>
    tpu.vector_store %arg6[%c0_6, %c0_7], %8 {strides = array<i32>} : memref<8x128xf32, #tpu.memory_space<vmem>>, vector<8x128xf32>,
    return
  }
  func.func @transform_0(%arg0: i32, %arg1: i32, %arg2: i32) -> (i32, i32) {
    %c0_i32 = arith.constant 0 : i32
    return %arg0, %arg2 : i32, i32
  }
  func.func @transform_1(%arg0: i32, %arg1: i32, %arg2: i32) -> (i32, i32) {
    %c0_i32 = arith.constant 0 : i32
    return %arg2, %arg1 : i32, i32
  }
  func.func @transform_2(%arg0: i32, %arg1: i32, %arg2: i32) -> (i32, i32) {
    %c0_i32 = arith.constant 0 : i32
    %c0_i32_0 = arith.constant 0 : i32
    return %c0_i32, %arg1 : i32, i32
  }
  func.func @transform_3(%arg0: i32, %arg1: i32, %arg2: i32) -> (i32, i32) {
    %c0_i32 = arith.constant 0 : i32
    return %arg0, %arg1 : i32, i32
  }
}

</mosaic_0001>

<llo_original>
// kernel: linear_probe_forward.1
$region0: #{linear_probe_forward.1}
  #allocation0 [shape = 'u32[]', space=smem, size = 0x4, offset = 0x4, fixed_abs, tag = 'smem constant byte address 0x4 - core index']
  #allocation1 [shape = 'u32[144,128]{1,0:T(1,128)}', space=vmem, size = 0x12000, scoped, tag = 'internal scratch']
  %s0 = inlined_call_operand.hbm [shape: f32[8,64], index: 0, kind: input, shape index: {}]
  %s1 = inlined_call_operand.hbm [shape: bf16[64,128], index: 1, kind: input, shape index: {}]
  %s2 = inlined_call_operand.vmem [shape: f32[1,128], index: 2, kind: input, shape index: {}]
  %s3 = inlined_call_operand.hbm [shape: f32[8,128], index: 3, kind: output, shape index: {}]
  %s4 = sld [smem:[#allocation0]]
  $region34: #{linear_probe_forward.1} parent=0
    _
  %s6 = ssub.s32 1, %s4
  %s7 = scalar_select 0, %s6, %s4
  $region1: #{linear_probe_forward.1} parent=0
    #allocation2 [shape = 'u8[4096]{0}', space=vmem, size = 0x1000, scoped, tag = 'input window, operand 0, single buffered']
    #allocation3 [shape = 's32[1]{0}', space=sflag, size = 0x4, scoped, tag = 'scoped memory for linear_probe_forward.1']
    #allocation4 [shape = 's32[1]{0}', space=sflag, size = 0x4, scoped, tag = 'scoped memory for linear_probe_forward.1']
    #allocation5 [shape = 'u8[16384]{0}', space=vmem, size = 0x4000, scoped, tag = 'input window, operand 1, single buffered']
    #allocation6 [shape = 's32[1]{0}', space=sflag, size = 0x4, scoped, tag = 'scoped memory for linear_probe_forward.1']
    #allocation7 [shape = 'u8[4096]{0}', space=vmem, size = 0x1000, scoped, tag = 'output window, operand 0, single buffered']
    %8 = vsyncpa [#allocation3], 0
    %9 = vsyncpa [#allocation6], 0
    %10 = vsyncpa [#allocation4], 0
    // Predicated region
    $region2: #{linear_probe_forward.1} parent=1 // pred_check
      _
    $region3: #{linear_probe_forward.1} parent=1 // pred_check_branch
      %12 = sbr.rel (0) target = $region5
    $region4: #{linear_probe_forward.1} parent=1 // pred_region
      %s14 = ssub.s32 128, 128
      %15 = vsyncadd [#allocation3], %s14
      %s17 = sshll.u32 [#allocation2], 4
      %s18 = int_to_ptr.vmem [resolvable:$true] %s17
      %20 = dma.hbm_to_vmem [thread:$0]  %s0, 128, %s18, [#allocation3]
    $region5: #{linear_probe_forward.1} parent=1 // pred_fallthru
      _
    // Predicated region
    $region6: #{linear_probe_forward.1} parent=1 // pred_check
      _
    $region7: #{linear_probe_forward.1} parent=1 // pred_check_branch
      %22 = sbr.rel (0) target = $region9
    $region8: #{linear_probe_forward.1} parent=1 // pred_region
      %s24 = ssub.s32 512, 512
      %25 = vsyncadd [#allocation6], %s24
      %s26 = sshll.u32 [#allocation5], 4
      %s27 = int_to_ptr.vmem [resolvable:$true] %s26
      %32 = dma.hbm_to_vmem [thread:$0]  %s1, 512, %s27, [#allocation6], 64, 64, 4
    $region9: #{linear_probe_forward.1} parent=1 // pred_fallthru
      _
    // Predicated region
    $region10: #{linear_probe_forward.1} parent=1 // pred_check
      _
    $region11: #{linear_probe_forward.1} parent=1 // pred_check_branch
      %34 = sbr.rel (0) target = $region13
    $region12: #{linear_probe_forward.1} parent=1 // pred_region
      _
    $region13: #{linear_probe_forward.1} parent=1 // pred_fallthru
      _
    // Predicated region
    $region14: #{linear_probe_forward.1} parent=1 // pred_check
      _
    $region15: #{linear_probe_forward.1} parent=1 // pred_check_branch
      %36 = sbr.rel (0) target = $region17
    $region16: #{linear_probe_forward.1} parent=1 // pred_region
      %37 = dma.done [#allocation3], 128
    $region17: #{linear_probe_forward.1} parent=1 // pred_fallthru
      _
    // Predicated region
    $region18: #{linear_probe_forward.1} parent=1 // pred_check
      _
    $region19: #{linear_probe_forward.1} parent=1 // pred_check_branch
      %39 = sbr.rel (0) target = $region21
    $region20: #{linear_probe_forward.1} parent=1 // pred_region
      %40 = dma.done [#allocation6], 512
    $region21: #{linear_probe_forward.1} parent=1 // pred_fallthru
      _
    %p42 = scmp.eq.s32.totalorder 0, 0
    // Predicated region
    $region22: #{linear_probe_forward.1} parent=1 // pred_check
      %p43 = pneg %p42
    $region23: #{linear_probe_forward.1} parent=1 // pred_check_branch
      %45 = sbr.rel (%p43) target = $region25
    $region24: #{linear_probe_forward.1} parent=1 // pred_region
      %v46 = vld [vmem:[%s2] sm:$0x1]
      %v48 = vlaneseq
      %v49 = vshrl.u32 %v48, 7
      %v50 = vsub.s32 0, %v49
      %v51 = vrot.slane %v46, %v50
      %53 = vst [vmem:[#allocation7] sm:$0xff] %v51
    $region25: #{linear_probe_forward.1} parent=1 // pred_fallthru
      _
    %v54 = vld [vmem:[#allocation7] sm:$0xff]
    %v55 = vld [vmem:[#allocation2] sm:$0xff]
    %v56 = vpack.c.bf16 %v55, %v55
    %v57 = vld [vmem:[#allocation5] sm:$0xf]
    %v58 = vld [vmem:[#allocation5 + $0x4] sm:$0xf]
    %v59 = vld [vmem:[#allocation5 + $0x8] sm:$0xf]
    %v60 = vld [vmem:[#allocation5 + $0xc] sm:$0xf]
    %v61 = vld [vmem:[#allocation5 + $0x10] sm:$0xf]
    %v62 = vld [vmem:[#allocation5 + $0x14] sm:$0xf]
    %v63 = vld [vmem:[#allocation5 + $0x18] sm:$0xf]
    %v64 = vld [vmem:[#allocation5 + $0x1c] sm:$0xf]
    %v73 = vunpack.c.l.b16 %v57
    %v74 = vunpack.c.l.b16 %v58
    %v75 = vunpack.c.l.b16 %v59
    %v76 = vunpack.c.l.b16 %v60
    %v77 = vunpack.c.l.b16 %v61
    %v78 = vunpack.c.l.b16 %v62
    %v79 = vunpack.c.l.b16 %v63
    %v80 = vunpack.c.l.b16 %v64
    %v81 = vpack.c.b16 %v74, %v73
    %v82 = vpack.c.b16 %v76, %v75
    %v83 = vpack.c.b16 %v78, %v77
    %v84 = vpack.c.b16 %v80, %v79
    %vm89 = vcmask 523264
    %v91 = vsel %vm89, %v56, 0
    %93 = vmatprep.subr.bf16.mxu0 0
    %94 = vmatpush1.bf16.msra.mxu0 %v81
    %95 = vmatprep.subr.bf16.mxu0 0
    %96 = vmatpush1.bf16.msra.mxu0 %v82
    %97 = vmatprep.subr.bf16.mxu0 0
    %98 = vmatpush1.bf16.msra.mxu0 %v83
    %99 = vmatprep.subr.bf16.mxu0 0
    %100 = vmatpush1.bf16.msra.mxu0 %v84
    %101 = vmatprep.subr.bf16.mxu0 0
    %102 = vmatpush1.bf16.msra.mxu0 0
    %103 = vmatprep.subr.bf16.mxu0 0
    %104 = vmatpush1.bf16.msra.mxu0 0
    %105 = vmatprep.subr.bf16.mxu0 0
    %106 = vmatpush1.bf16.msra.mxu0 0
    %107 = vmatprep.subr.bf16.mxu0 0
    %108 = vmatpush1.bf16.msra.mxu0 0
    %109 = vmatprep.subr.bf16.mxu0 0
    %110 = vmatpush1.bf16.msra.mxu0 0
    %111 = vmatprep.subr.bf16.mxu0 0
    %112 = vmatpush1.bf16.msra.mxu0 0
    %113 = vmatprep.subr.bf16.mxu0 0
    %114 = vmatpush1.bf16.msra.mxu0 0
    %115 = vmatprep.subr.bf16.mxu0 0
    %116 = vmatpush1.bf16.msra.mxu0 0
    %117 = vmatprep.subr.bf16.mxu0 0
    %118 = vmatpush1.bf16.msra.mxu0 0
    %119 = vmatprep.subr.bf16.mxu0 0
    %120 = vmatpush1.bf16.msra.mxu0 0
    %121 = vmatprep.subr.bf16.mxu0 0
    %122 = vmatpush1.bf16.msra.mxu0 0
    %123 = vmatprep.subr.bf16.mxu0 0
    %124 = vmatpush1.bf16.msra.mxu0 0
    %125 = vmatprep.mubr.bf16.mxu0 0
    %126 = vmatmul.mubr.bf16.gmra.mrb[0].mxu0 %v91
    %v127 = vpop.f32.mrb[0].mxu0
    %v128 = vadd.f32 0.0, %v127
    %v129 = vpop.f32.mrb[0].mxu0
    %v130 = vpop.f32.mrb[0].mxu0
    %v131 = vpop.f32.mrb[0].mxu0
    %132 = vdwg.mxu0
    %v133 = vadd.f32 %v54, %v128
    %134 = vst [vmem:[#allocation7] sm:$0xff] %v133
    // Predicated region
    $region26: #{linear_probe_forward.1} parent=1 // pred_check
      _
    $region27: #{linear_probe_forward.1} parent=1 // pred_check_branch
      %136 = sbr.rel (0) target = $region29
    $region28: #{linear_probe_forward.1} parent=1 // pred_region
      %s138 = ssub.s32 128, 128
      %139 = vsyncadd [#allocation4], %s138
      %s141 = sshll.u32 [#allocation7], 4
      %s142 = int_to_ptr.vmem [resolvable:$true] %s141
      %144 = dma.vmem_to_hbm [thread:$0]  %s142, 128, %s3, [#allocation4]
    $region29: #{linear_probe_forward.1} parent=1 // pred_fallthru
      _
    // Predicated region
    $region30: #{linear_probe_forward.1} parent=1 // pred_check
      _
    $region31: #{linear_probe_forward.1} parent=1 // pred_check_branch
      %146 = sbr.rel (0) target = $region33
    $region32: #{linear_probe_forward.1} parent=1 // pred_region
      %147 = dma.done [#allocation4], 128
    $region33: #{linear_probe_forward.1} parent=1 // pred_fallthru
      _
    %148 = vsyncpa [#allocation3], 1
    %149 = vsyncpa [#allocation6], 1
    %150 = vsyncpa [#allocation4], 1

</llo_original>
